<compile_context>
chip_gen: v6e
topology: v6e:2x2x1
jax: 0.10.0
libtpu: 0.0.40
codegen_flags: <defaults>
</compile_context>

<pallas_src>
import math

import jax
import jax.numpy as jnp
from jax.experimental import pallas as pl
from jax.experimental.pallas import tpu as pltpu


def _dma_copy_kernel(x_hbm_ref, o_hbm_ref, sem):
    # Pure DMA-engine work: one HBM -> HBM copy of the entire array.
    cp = pltpu.make_async_copy(x_hbm_ref, o_hbm_ref, sem)
    cp.start()
    cp.wait()


# Below this size the fixed pallas_call launch overhead dominates; XLA's
# native copy is strictly cheaper and keeps the "distinct buffer" contract.
_SMALL_COPY_BYTES = 1 << 20  # 1 MiB


def _pallas_identity_copy(x, *, force_pallas=False):
    """Materializing identity copy of `x` via a single HBM->HBM DMA."""
    total = math.prod(x.shape) if x.shape else 1
    if total == 0:
        return x

    nbytes = total * jnp.dtype(x.dtype).itemsize
    if not force_pallas and nbytes < _SMALL_COPY_BYTES:
        # Small-input short-circuit (review item): avoid kernel launch cost.
        return jnp.copy(x)

    return pl.pallas_call(
        _dma_copy_kernel,
        out_shape=jax.ShapeDtypeStruct(x.shape, x.dtype),
        in_specs=[pl.BlockSpec(memory_space=pl.ANY)],
        out_specs=pl.BlockSpec(memory_space=pl.ANY),
        scratch_shapes=[pltpu.SemaphoreType.DMA],
        cost_estimate=pl.CostEstimate(
            flops=0,
            transcendentals=0,
            bytes_accessed=2 * nbytes,
        ),
    )(x)


class PrintPallas:
    """JAX/Pallas equivalent of torch_utils.basic_modules.Print.

    Default path is a zero-copy identity (matching PyTorch semantics exactly).
    Set `materialize=True` to route the pass-through through the Pallas
    HBM->HBM DMA copy kernel (distinct output buffer).
    """

    def __init__(self, _type, materialize=False):
        self.type = _type
        self.materialize = materialize

    def __call__(self, x):
        # Host-side print of static metadata (matches PyTorch eager prints).
        # TODO(synk): under jax.jit this fires once per trace, not per call.
        if self.type == "size":
            print(tuple(x.shape))
        elif self.type == "type":
            print(str(x.dtype))
        elif self.type == "verbose":
            print(
                "size: {}, type: {}, dim: {}".format(
                    tuple(x.shape), str(x.dtype), x.ndim
                )
            )
        if self.materialize:
            return _pallas_identity_copy(x)
        # Pure identity pass-through: no HBM traffic at all.
        return x


if __name__ == "__main__":
    key = jax.random.PRNGKey(0)
    # NCHW input, consistent with typical conv-pipeline usage of Print.
    x = jax.random.normal(key, (2, 4, 16, 16), dtype=jnp.float32)

    # Preferred hot path: zero-copy identity.
    mod = PrintPallas("verbose")
    y = jax.block_until_ready(mod(x))
    assert y.shape == x.shape and y.dtype == x.dtype
    assert bool(jnp.all(y == x))

    # Materializing path on a small input: takes the jnp.copy short-circuit.
    mod_copy = PrintPallas("size", materialize=True)
    y2 = jax.block_until_ready(mod_copy(x))
    assert y2.shape == x.shape and y2.dtype == x.dtype
    assert bool(jnp.all(y2 == x))

    # Exercise the Pallas DMA-copy kernel itself on the small input.
    y_dma = jax.block_until_ready(_pallas_identity_copy(x, force_pallas=True))
    assert y_dma.shape == x.shape and y_dma.dtype == x.dtype
    assert bool(jnp.all(y_dma == x))

    # Larger input (> 1 MiB) -> Pallas DMA path by default.
    x_big = jax.random.normal(jax.random.PRNGKey(1), (8, 32, 64, 64), jnp.float32)
    y_big = jax.block_until_ready(_pallas_identity_copy(x_big))
    assert bool(jnp.all(y_big == x_big))

    # Non-aligned odd shape -> no padding / slicing needed on the DMA path.
    x_odd = jax.random.normal(jax.random.PRNGKey(2), (3, 5, 7), jnp.float32)
    y_odd = jax.block_until_ready(_pallas_identity_copy(x_odd, force_pallas=True))
    assert bool(jnp.all(y_odd == x_odd))

    print("KERNEL_OK")
</pallas_src>

<mosaic_0001>
module attributes {stable_mosaic.version = 11 : i64} {
  func.func @_dma_copy_kernel(%arg0: memref<2x4x16x16xf32, #tpu.memory_space<any>>, %arg1: memref<2x4x16x16xf32, #tpu.memory_space<any>>, %arg2: memref<!tpu.dma_semaphore, #tpu.memory_space<semaphore_mem>>) attributes {dimension_semantics = [], scalar_prefetch = 0 : i64, scratch_operands = 1 : i64, tpu.core_type = #tpu.core_type<tc>} {
    tpu.enqueue_dma source(%arg0 : memref<2x4x16x16xf32, #tpu.memory_space<any>>) target(%arg1 : memref<2x4x16x16xf32, #tpu.memory_space<any>>) target_semaphore(%arg2 : memref<!tpu.dma_semaphore, #tpu.memory_space<semaphore_mem>>)
    tpu.wait_dma2 semaphore(%arg2 : memref<!tpu.dma_semaphore, #tpu.memory_space<semaphore_mem>>) src(%arg0 : memref<2x4x16x16xf32, #tpu.memory_space<any>>) dst(%arg1 : memref<2x4x16x16xf32, #tpu.memory_space<any>>)
    return
  }
}

</mosaic_0001>

<llo_original>
// kernel: tpu_custom_call.1
$region0: #{tpu_custom_call.1}
  #allocation0 [shape = 'u32[]', space=smem, size = 0x4, offset = 0x4, fixed_abs, tag = 'smem constant byte address 0x4 - core index']
  #allocation1 [shape = 'u32[144,128]{1,0:T(1,128)}', space=vmem, size = 0x12000, scoped, tag = 'internal scratch']
  #allocation2 [shape = 's32[1]{0}', space=sflag, size = 0x4, scoped, tag = 'scratch operand']
  #allocation3 [shape = 's32[]', space=sflag, size = 0x4, offset = 0, fixed_abs, tag = 'sflag constant byte address 0x0 - dummy sync flag']
  #allocation4 [shape = 'u32[0]{0}', space=smem, size = 0, offset = 0, fixed_abs, tag = 'smem constant byte address 0x0 - null']
  %s0 = inlined_call_operand.hbm [shape: f32[2,4,16,16], index: 0, kind: input, shape index: {}]
  %s1 = inlined_call_operand.hbm [shape: f32[2,4,16,16], index: 1, kind: output, shape index: {}]
  %s2 = sld [smem:[#allocation0]]
  $region2: #{tpu_custom_call.1} parent=0
    _
  %s4 = ssub.s32 1, %s2
  %s5 = scalar_select 0, %s4, %s2
  %s7 = sshll.u32 1, 14
  %s8 = sxor.u32 4294967295, %s7
  %12 = dma.general %s0, 2048, %s1, [#allocation2], 131072, [#allocation4], 0, 0
  %s13 = smul.u32 2, 4
  %s14 = smul.u32 %s13, 16
  %s15 = smul.u32 %s14, 1
  %s16 = sshll.u32 %s15, 4
  %17 = dma.done [#allocation2], %s16
  %18 = vsyncmov [#allocation2]
  %s19 = vpop.sfrf %18
  %p20 = scmp.eq.s32.totalorder %s19, 0
  %p21 = pneg %p20
  %23 = shalt.err (%p21)

</llo_original>
